<compile_context>
chip_gen: v5e
topology: v5e:2x2
jax: 0.10.0
libtpu: 0.0.40
codegen_flags: <defaults>
</compile_context>

<pallas_src>
import functools

import numpy as np
import jax
import jax.numpy as jnp
from jax.experimental import pallas as pl
from jax.experimental.pallas import tpu as pltpu


# ----------------------------------------------------------------------------
# Deterministic anchor generation (mirrors util.generate_anchor_cluster /
# util.replicate used by the PyTorch module's __init__).
# ----------------------------------------------------------------------------
def generate_anchor_cluster(P_h, P_w):
    num = len(P_h) * len(P_w)
    anchors = np.zeros((num, 2), dtype=np.float32)
    k = 0
    for i in range(len(P_w)):
        for j in range(len(P_h)):
            anchors[k, 0] = P_h[j]
            anchors[k, 1] = P_w[i]
            k += 1
    return anchors


def replicate(anchor_cluster, shape, stride):
    shift_h = np.arange(0, shape[0]) * stride
    shift_w = np.arange(0, shape[1]) * stride
    sh, sw = np.meshgrid(shift_h, shift_w)
    shifts = np.vstack((sh.ravel(), sw.ravel())).transpose()  # (K, 2)
    A = anchor_cluster.shape[0]
    K = shifts.shape[0]
    all_anchors = (anchor_cluster.reshape((1, A, 2))
                   + shifts.reshape((1, K, 2)).transpose((1, 0, 2)))
    return all_anchors.reshape((K * A, 2)).astype(np.float32)


# ----------------------------------------------------------------------------
# Pallas kernel: one grid step per batch block.
# ----------------------------------------------------------------------------
def _a2j_loss_kernel(resp_ref, off_ref, dep_ref, ann_xy_ref, ann_z_ref, w_ref,
                     out_ref, *, spatial_factor, batch_size, block_b, masked):
    # resp_ref   : (Bt, J, A)     anchor responses     (anchors on lanes)
    # off_ref    : (2, Bt, J, A)  [offset_x, offset_y]
    # dep_ref    : (Bt, J, A)     depths
    # ann_xy_ref : (2, Bt, J)     [gt_x, gt_y]         (joints on lanes)
    # ann_z_ref  : (Bt, 1, J)     gt_z                 (joints on lanes)
    # w_ref      : (A, 8)         columns [1, anchor_x, anchor_y, 0, ...]
    # out_ref    : (1, 8, 128)    lane 0 = sum of anchor losses in this block,
    #                             lane 1 = sum of joint-coord losses.
    resp = resp_ref[...]
    offx = off_ref[0]
    offy = off_ref[1]
    dep = dep_ref[...]
    bt, nj, na = resp.shape

    # softmax over the anchor (lane) axis == F.softmax(response, dim=0);
    # normalization by the per-row sum is deferred to the tiny (Bt, J)
    # reductions instead of dividing the full (Bt, J, A) tile.
    m = jnp.max(resp, axis=-1, keepdims=True)
    e = jnp.exp(resp - m)                                 # unnormalized weights

    # MXU: one (Bt*J, A) x (A, 8) matmul produces the three fixed-weight sums
    # [sum e, sum e*anchor_x, sum e*anchor_y] — no full-tile VPU multiplies,
    # no XLU lane reductions for these.
    e2 = e.reshape(bt * nj, na)
    red = jnp.dot(e2, w_ref[...], preferred_element_type=jnp.float32)
    red = red.reshape(bt, nj, 8)
    s = red[:, :, 0]                                      # softmax denominators
    sa0 = red[:, :, 1]                                    # sum e * anchor_x
    sa1 = red[:, :, 2]                                    # sum e * anchor_y

    # Data-dependent products (offset/depth vary per row -> can't ride the
    # MXU): three lane reductions, results already lane-dense as (Bt, J).
    so0 = jnp.sum(e * offx, axis=-1)                      # sum e * offset_x
    so1 = jnp.sum(e * offy, axis=-1)                      # sum e * offset_y
    sd = jnp.sum(e * dep, axis=-1)                        # sum e * depth

    # Exact reciprocal on the small (Bt, J) denominators (flip approx=True for
    # the EUP vrcp if ~1e-4 relative error is acceptable).
    inv_s = pl.reciprocal(s)
    ap0 = sa0 * inv_s                                     # anchor-only x pred
    ap1 = sa1 * inv_s                                     # anchor-only y pred
    jc0 = ap0 + so0 * inv_s                               # joint-coordinate x
    jc1 = ap1 + so1 * inv_s                               # joint-coordinate y
    pz = sd * inv_s                                       # depth prediction

    gtx = ann_xy_ref[0]                                   # (Bt, J)
    gty = ann_xy_ref[1]                                   # (Bt, J)
    gtz = ann_z_ref[...]                                  # (Bt, 1, J)

    def smooth_l1(d, delta):
        return jnp.where(d <= delta, (0.5 / delta) * d * d, d - 0.5 * delta)

    if masked:
        # Only needed when B was padded up to a multiple of the batch block.
        b_idx = (jax.lax.broadcasted_iota(jnp.int32, (bt, 1), 0)
                 + pl.program_id(0) * block_b)
        valid = (b_idx < batch_size).astype(jnp.float32)  # (Bt, 1)
        valid3 = valid[:, :, None]                        # (Bt, 1, 1)

        def rsum2(x):
            return jnp.sum(x * valid)

        def rsum3(x):
            return jnp.sum(x * valid3)
    else:
        rsum2 = jnp.sum
        rsum3 = jnp.sum

    # loss_anchors / loss_xy: per-batch mean over (J, 2) -> block sum / (2J).
    la_sum = rsum2(smooth_l1(jnp.abs(gtx - ap0), 1.0)
                   + smooth_l1(jnp.abs(gty - ap1), 1.0)) * (1.0 / (2 * nj))
    lxy_sum = rsum2(smooth_l1(jnp.abs(gtx - jc0), 1.0)
                    + smooth_l1(jnp.abs(gty - jc1), 1.0)) * (1.0 / (2 * nj))

    # The PyTorch module broadcasts gt_z (J,) against pred_z (J, 1), producing
    # a (J, J) difference matrix; reproduce that exact semantics per batch.
    dz = jnp.abs(gtz - pz[:, :, None])                    # (Bt, J, J)
    lz_sum = rsum3(smooth_l1(dz, 3.0)) * (1.0 / (nj * nj))

    lj_sum = lxy_sum * spatial_factor + lz_sum

    # Lane-dense output slab: losses live in lanes 0 / 1 of an (8, 128) block.
    lane = jax.lax.broadcasted_iota(jnp.int32, (8, 128), 1)
    blk = jnp.where(lane == 0, la_sum, jnp.where(lane == 1, lj_sum, 0.0))
    out_ref[...] = blk.reshape(1, 8, 128)


def a2j_loss_pallas(responses, offsets, depths, annotations, anchor_coords,
                    spatial_factor=0.1, max_block_b=128):
    B, A, J, _ = responses.shape

    # Block-size selection:
    #   * bt <= 128 keeps the double-buffered head tiles (4 MiB x2 at bt=128)
    #     inside v5e's 16 MiB default scoped VMEM; v6e can take max_block_b=256.
    #   * For B >= 32, use at least two grid steps (bt ~ ceil(B/2) rounded up
    #     to 8) so the "parallel" grid axis spans both v7x TensorCores.
    if B >= 32:
        bt = min(int(max_block_b), ((B + 1) // 2 + 7) // 8 * 8)
    else:
        bt = B
    nb = -(-B // bt)
    b_pad = nb * bt

    # Per-head transposes (anchors minor).  No concat: the packed 4*B*J*A
    # tensor is never materialized in HBM; each head is read+written once.
    resp_k = jnp.transpose(responses[..., 0], (0, 2, 1))        # (B, J, A)
    off_k = jnp.transpose(offsets, (3, 0, 2, 1))                # (2, B, J, A)
    dep_k = jnp.transpose(depths[..., 0], (0, 2, 1))            # (B, J, A)
    # Ground truth: x/y with joints on lanes; z with joints on lanes in a
    # (B, 1, J) layout (the module's (J, J) broadcast in the z loss needs gt_z
    # on a different axis than pred_z).
    ann_xy_k = jnp.transpose(annotations[:, :, :2], (2, 0, 1))  # (2, B, J)
    ann_z_k = annotations[:, :, 2][:, None, :]                  # (B, 1, J)

    # MXU weight matrix: columns [1, anchor_x, anchor_y, 0, 0, 0, 0, 0].
    w = jnp.concatenate(
        [jnp.ones((A, 1), jnp.float32),
         anchor_coords.astype(jnp.float32),
         jnp.zeros((A, 5), jnp.float32)], axis=1)               # (A, 8)

    if b_pad > B:
        pad = b_pad - B
        resp_k = jnp.pad(resp_k, ((0, pad), (0, 0), (0, 0)))
        off_k = jnp.pad(off_k, ((0, 0), (0, pad), (0, 0), (0, 0)))
        dep_k = jnp.pad(dep_k, ((0, pad), (0, 0), (0, 0)))
        ann_xy_k = jnp.pad(ann_xy_k, ((0, 0), (0, pad), (0, 0)))
        ann_z_k = jnp.pad(ann_z_k, ((0, pad), (0, 0), (0, 0)))

    kernel = functools.partial(
        _a2j_loss_kernel,
        spatial_factor=float(spatial_factor),
        batch_size=int(B),
        block_b=int(bt),
        masked=bool(b_pad > B),
    )

    partials = pl.pallas_call(
        kernel,
        grid=(nb,),
        in_specs=[
            pl.BlockSpec((bt, J, A), lambda i: (i, 0, 0)),       # responses
            pl.BlockSpec((2, bt, J, A), lambda i: (0, i, 0, 0)), # offsets x/y
            pl.BlockSpec((bt, J, A), lambda i: (i, 0, 0)),       # depths
            pl.BlockSpec((2, bt, J), lambda i: (0, i, 0)),       # gt x / y
            pl.BlockSpec((bt, 1, J), lambda i: (i, 0, 0)),       # gt z
            pl.BlockSpec((A, 8), lambda i: (0, 0)),              # MXU weights
        ],
        out_specs=pl.BlockSpec((1, 8, 128), lambda i: (i, 0, 0)),
        out_shape=jax.ShapeDtypeStruct((nb, 8, 128), jnp.float32),
        compiler_params=pltpu.CompilerParams(
            dimension_semantics=("parallel",)),
    )(resp_k, off_k, dep_k, ann_xy_k, ann_z_k, w)

    inv_b = 1.0 / float(B)
    loss_anchors = jnp.sum(partials[:, 0, 0]) * inv_b
    loss_joints = jnp.sum(partials[:, 0, 1]) * inv_b
    return loss_anchors.reshape((1,)), loss_joints.reshape((1,))


# ----------------------------------------------------------------------------
# Pure-JAX reference (direct transcription of the PyTorch forward).
# ----------------------------------------------------------------------------
def a2j_loss_reference(responses, offsets, depths, annotations, anchor_coords,
                       spatial_factor=0.1):
    B = responses.shape[0]
    las, ljs = [], []
    for j in range(B):
        resp = responses[j]                                 # (A, J, 1)
        hm1 = jax.nn.softmax(resp, axis=0)                  # (A, J, 1)
        hm2 = jnp.broadcast_to(hm1, (hm1.shape[0], hm1.shape[1], 2))
        jc = anchor_coords[:, None, :] + offsets[j]         # (A, J, 2)
        jc = (hm2 * jc).sum(0)                              # (J, 2)
        ann = annotations[j]
        gt_xy = ann[:, :2]
        da = jnp.abs(gt_xy - (hm2 * anchor_coords[:, None, :]).sum(0))
        la = jnp.where(da <= 1.0, 0.5 * da * da, da - 0.5).mean()
        dxy = jnp.abs(gt_xy - jc)
        lxy = jnp.where(dxy <= 1.0, 0.5 * dxy * dxy, dxy - 0.5).mean() * spatial_factor
        gt_z = ann[:, 2]
        dz = jnp.abs(gt_z - (hm1 * depths[j]).sum(0))       # (J,) vs (J,1) -> (J,J)
        lz = jnp.where(dz <= 3.0, (1.0 / 6.0) * dz * dz, dz - 1.5).mean()
        las.append(la)
        ljs.append(lxy + lz)
    return (jnp.stack(las).mean(keepdims=True),
            jnp.stack(ljs).mean(keepdims=True))


if __name__ == "__main__":
    # Module config defaults: P_h=[2,6], P_w=[2,6], shape=[8,4], stride=8
    P_h, P_w = [2, 6], [2, 6]
    fmap_shape, stride = [8, 4], 8
    spatial_factor = 0.1

    anchor_np = replicate(generate_anchor_cluster(P_h, P_w), fmap_shape, stride)
    anchor_coords = jnp.asarray(anchor_np)                  # (128, 2)
    A = anchor_coords.shape[0]                              # 128 anchors
    B, J = 2, 16                                            # batch, joints

    key = jax.random.PRNGKey(0)
    k1, k2, k3, k4, k5 = jax.random.split(key, 5)
    responses = jax.random.normal(k1, (B, A, J, 1), dtype=jnp.float32)
    offsets = jax.random.normal(k2, (B, A, J, 2), dtype=jnp.float32)
    depths = 50.0 + 5.0 * jax.random.normal(k3, (B, A, J, 1), dtype=jnp.float32)
    ann_xy = jax.random.uniform(k4, (B, J, 2), dtype=jnp.float32,
                                minval=0.0, maxval=60.0)
    ann_z = jax.random.uniform(k5, (B, J, 1), dtype=jnp.float32,
                               minval=40.0, maxval=60.0)
    annotations = jnp.concatenate([ann_xy, ann_z], axis=-1)  # (B, J, 3)

    fn = jax.jit(functools.partial(a2j_loss_pallas, spatial_factor=spatial_factor))
    la, lj = fn(responses, offsets, depths, annotations, anchor_coords)
    jax.block_until_ready((la, lj))

    la_r, lj_r = a2j_loss_reference(responses, offsets, depths, annotations,
                                    anchor_coords, spatial_factor)
    np.testing.assert_allclose(np.asarray(la), np.asarray(la_r), rtol=2e-3, atol=1e-3)
    np.testing.assert_allclose(np.asarray(lj), np.asarray(lj_r), rtol=2e-3, atol=1e-3)

    print("KERNEL_OK")
</pallas_src>

<mosaic_0001>
module attributes {stable_mosaic.version = 11 : i64} {
  func.func @_a2j_loss_kernel(%arg0: i32, %arg1: memref<2x16x128xf32, #tpu.memory_space<vmem>>, %arg2: memref<2x2x16x128xf32, #tpu.memory_space<vmem>>, %arg3: memref<2x16x128xf32, #tpu.memory_space<vmem>>, %arg4: memref<2x2x16xf32, #tpu.memory_space<vmem>>, %arg5: memref<2x1x16xf32, #tpu.memory_space<vmem>>, %arg6: memref<128x8xf32, #tpu.memory_space<vmem>>, %arg7: memref<1x8x128xf32, #tpu.memory_space<vmem>>) attributes {dimension_semantics = [#tpu.dimension_semantics<parallel>], iteration_bounds = array<i64: 1>, scalar_prefetch = 0 : i64, scratch_operands = 0 : i64, tpu.core_type = #tpu.core_type<tc>, window_params = [{transform_indices = @transform_0, window_bounds = array<i64: 2, 16, 128>}, {transform_indices = @transform_1, window_bounds = array<i64: 2, 2, 16, 128>}, {transform_indices = @transform_2, window_bounds = array<i64: 2, 16, 128>}, {transform_indices = @transform_3, window_bounds = array<i64: 2, 2, 16>}, {transform_indices = @transform_4, window_bounds = array<i64: 2, 1, 16>}, {pipeline_mode = #tpu.pipeline_mode<synchronous>, transform_indices = @transform_5, window_bounds = array<i64: 128, 8>}, {transform_indices = @transform_6, window_bounds = array<i64: 1, 8, 128>}]} {
    %c0 = arith.constant 0 : index
    %c0_0 = arith.constant 0 : index
    %c0_1 = arith.constant 0 : index
    %0 = vector.load %arg1[%c0, %c0_0, %c0_1] : memref<2x16x128xf32, #tpu.memory_space<vmem>>, vector<2x16x128xf32>
    %c0_2 = arith.constant 0 : index
    %c0_3 = arith.constant 0 : index
    %c0_4 = arith.constant 0 : index
    %c0_5 = arith.constant 0 : index
    %1 = vector.load %arg2[%c0_2, %c0_3, %c0_4, %c0_5] : memref<2x2x16x128xf32, #tpu.memory_space<vmem>>, vector<1x2x16x128xf32>
    %2 = vector.shape_cast %1 : vector<1x2x16x128xf32> to vector<2x16x128xf32>
    %c1 = arith.constant 1 : index
    %c0_6 = arith.constant 0 : index
    %c0_7 = arith.constant 0 : index
    %c0_8 = arith.constant 0 : index
    %3 = vector.load %arg2[%c1, %c0_6, %c0_7, %c0_8] : memref<2x2x16x128xf32, #tpu.memory_space<vmem>>, vector<1x2x16x128xf32>
    %4 = vector.shape_cast %3 : vector<1x2x16x128xf32> to vector<2x16x128xf32>
    %c0_9 = arith.constant 0 : index
    %c0_10 = arith.constant 0 : index
    %c0_11 = arith.constant 0 : index
    %5 = vector.load %arg3[%c0_9, %c0_10, %c0_11] : memref<2x16x128xf32, #tpu.memory_space<vmem>>, vector<2x16x128xf32>
    %cst = arith.constant dense<0xFF800000> : vector<2x16xf32>
    %6 = vector.multi_reduction <maximumf>, %0, %cst [2] : vector<2x16x128xf32> to vector<2x16xf32>
    %7 = vector.shape_cast %6 : vector<2x16xf32> to vector<2x16x1xf32>
    %8 = vector.broadcast %7 : vector<2x16x1xf32> to vector<2x16x128xf32>
    %9 = arith.subf %0, %8 : vector<2x16x128xf32>
    %10 = math.exp %9 : vector<2x16x128xf32>
    %11 = vector.shape_cast %10 : vector<2x16x128xf32> to vector<32x128xf32>
    %c0_12 = arith.constant 0 : index
    %c0_13 = arith.constant 0 : index
    %12 = vector.load %arg6[%c0_12, %c0_13] : memref<128x8xf32, #tpu.memory_space<vmem>>, vector<128x8xf32>
    %cst_14 = arith.constant dense<0.000000e+00> : vector<32x8xf32>
    %13 = tpu.matmul %11, %12, %cst_14 {dimension_numbers = #tpu.dot_dimension_numbers<[1], [0], [0], [1], [0, 0, 1, 1], [], []>} : vector<32x128xf32>, vector<128x8xf32>, vector<32x8xf32> -> vector<32x8xf32>
    %14 = vector.shape_cast %13 : vector<32x8xf32> to vector<2x16x8xf32>
    %15 = vector.extract_strided_slice %14 {offsets = [0, 0, 0], sizes = [2, 16, 1], strides = [1, 1, 1]} : vector<2x16x8xf32> to vector<2x16x1xf32>
    %16 = vector.shape_cast %15 : vector<2x16x1xf32> to vector<2x16xf32>
    %17 = vector.extract_strided_slice %14 {offsets = [0, 0, 1], sizes = [2, 16, 1], strides = [1, 1, 1]} : vector<2x16x8xf32> to vector<2x16x1xf32>
    %18 = vector.shape_cast %17 : vector<2x16x1xf32> to vector<2x16xf32>
    %19 = vector.extract_strided_slice %14 {offsets = [0, 0, 2], sizes = [2, 16, 1], strides = [1, 1, 1]} : vector<2x16x8xf32> to vector<2x16x1xf32>
    %20 = vector.shape_cast %19 : vector<2x16x1xf32> to vector<2x16xf32>
    %21 = arith.mulf %10, %2 : vector<2x16x128xf32>
    %cst_15 = arith.constant dense<0.000000e+00> : vector<2x16xf32>
    %22 = vector.multi_reduction <add>, %21, %cst_15 [2] : vector<2x16x128xf32> to vector<2x16xf32>
    %23 = arith.mulf %10, %4 : vector<2x16x128xf32>
    %cst_16 = arith.constant dense<0.000000e+00> : vector<2x16xf32>
    %24 = vector.multi_reduction <add>, %23, %cst_16 [2] : vector<2x16x128xf32> to vector<2x16xf32>
    %25 = arith.mulf %10, %5 : vector<2x16x128xf32>
    %cst_17 = arith.constant dense<0.000000e+00> : vector<2x16xf32>
    %26 = vector.multi_reduction <add>, %25, %cst_17 [2] : vector<2x16x128xf32> to vector<2x16xf32>
    %27 = tpu.reciprocal %16 : vector<2x16xf32> -> vector<2x16xf32>
    %28 = arith.mulf %18, %27 : vector<2x16xf32>
    %29 = arith.mulf %20, %27 : vector<2x16xf32>
    %30 = arith.mulf %22, %27 : vector<2x16xf32>
    %31 = arith.addf %28, %30 : vector<2x16xf32>
    %32 = arith.mulf %24, %27 : vector<2x16xf32>
    %33 = arith.addf %29, %32 : vector<2x16xf32>
    %34 = arith.mulf %26, %27 : vector<2x16xf32>
    %c0_18 = arith.constant 0 : index
    %c0_19 = arith.constant 0 : index
    %c0_20 = arith.constant 0 : index
    %35 = vector.load %arg4[%c0_18, %c0_19, %c0_20] : memref<2x2x16xf32, #tpu.memory_space<vmem>>, vector<1x2x16xf32>
    %36 = vector.shape_cast %35 : vector<1x2x16xf32> to vector<2x16xf32>
    %c1_21 = arith.constant 1 : index
    %c0_22 = arith.constant 0 : index
    %c0_23 = arith.constant 0 : index
    %37 = vector.load %arg4[%c1_21, %c0_22, %c0_23] : memref<2x2x16xf32, #tpu.memory_space<vmem>>, vector<1x2x16xf32>
    %38 = vector.shape_cast %37 : vector<1x2x16xf32> to vector<2x16xf32>
    %c0_24 = arith.constant 0 : index
    %c0_25 = arith.constant 0 : index
    %c0_26 = arith.constant 0 : index
    %39 = vector.load %arg5[%c0_24, %c0_25, %c0_26] : memref<2x1x16xf32, #tpu.memory_space<vmem>>, vector<2x1x16xf32>
    %40 = arith.subf %36, %28 : vector<2x16xf32>
    %41 = math.absf %40 : vector<2x16xf32>
    %cst_27 = arith.constant 1.000000e+00 : f32
    %42 = vector.broadcast %cst_27 : f32 to vector<2x16xf32>
    %43 = arith.cmpf ole, %41, %42 : vector<2x16xf32>
    %cst_28 = arith.constant 5.000000e-01 : f32
    %44 = vector.broadcast %cst_28 : f32 to vector<2x16xf32>
    %45 = arith.mulf %44, %41 : vector<2x16xf32>
    %46 = arith.mulf %45, %41 : vector<2x16xf32>
    %cst_29 = arith.constant 5.000000e-01 : f32
    %47 = vector.broadcast %cst_29 : f32 to vector<2x16xf32>
    %48 = arith.subf %41, %47 : vector<2x16xf32>
    %49 = arith.select %43, %46, %48 : vector<2x16xi1>, vector<2x16xf32>
    %50 = arith.subf %38, %29 : vector<2x16xf32>
    %51 = math.absf %50 : vector<2x16xf32>
    %cst_30 = arith.constant 1.000000e+00 : f32
    %52 = vector.broadcast %cst_30 : f32 to vector<2x16xf32>
    %53 = arith.cmpf ole, %51, %52 : vector<2x16xf32>
    %cst_31 = arith.constant 5.000000e-01 : f32
    %54 = vector.broadcast %cst_31 : f32 to vector<2x16xf32>
    %55 = arith.mulf %54, %51 : vector<2x16xf32>
    %56 = arith.mulf %55, %51 : vector<2x16xf32>
    %cst_32 = arith.constant 5.000000e-01 : f32
    %57 = vector.broadcast %cst_32 : f32 to vector<2x16xf32>
    %58 = arith.subf %51, %57 : vector<2x16xf32>
    %59 = arith.select %53, %56, %58 : vector<2x16xi1>, vector<2x16xf32>
    %60 = arith.addf %49, %59 : vector<2x16xf32>
    %61 = vector.shape_cast %60 : vector<2x16xf32> to vector<1x2x16xf32>
    %cst_33 = arith.constant dense<0.000000e+00> : vector<1xf32>
    %62 = vector.multi_reduction <add>, %61, %cst_33 [1, 2] : vector<1x2x16xf32> to vector<1xf32>
    %63 = vector.shape_cast %62 : vector<1xf32> to vector<1x1x1xf32>
    %64 = vector.extract %63[0, 0, 0] : f32 from vector<1x1x1xf32>
    %cst_34 = arith.constant 3.125000e-02 : f32
    %65 = arith.mulf %64, %cst_34 : f32
    %66 = arith.subf %36, %31 : vector<2x16xf32>
    %67 = math.absf %66 : vector<2x16xf32>
    %cst_35 = arith.constant 1.000000e+00 : f32
    %68 = vector.broadcast %cst_35 : f32 to vector<2x16xf32>
    %69 = arith.cmpf ole, %67, %68 : vector<2x16xf32>
    %cst_36 = arith.constant 5.000000e-01 : f32
    %70 = vector.broadcast %cst_36 : f32 to vector<2x16xf32>
    %71 = arith.mulf %70, %67 : vector<2x16xf32>
    %72 = arith.mulf %71, %67 : vector<2x16xf32>
    %cst_37 = arith.constant 5.000000e-01 : f32
    %73 = vector.broadcast %cst_37 : f32 to vector<2x16xf32>
    %74 = arith.subf %67, %73 : vector<2x16xf32>
    %75 = arith.select %69, %72, %74 : vector<2x16xi1>, vector<2x16xf32>
    %76 = arith.subf %38, %33 : vector<2x16xf32>
    %77 = math.absf %76 : vector<2x16xf32>
    %cst_38 = arith.constant 1.000000e+00 : f32
    %78 = vector.broadcast %cst_38 : f32 to vector<2x16xf32>
    %79 = arith.cmpf ole, %77, %78 : vector<2x16xf32>
    %cst_39 = arith.constant 5.000000e-01 : f32
    %80 = vector.broadcast %cst_39 : f32 to vector<2x16xf32>
    %81 = arith.mulf %80, %77 : vector<2x16xf32>
    %82 = arith.mulf %81, %77 : vector<2x16xf32>
    %cst_40 = arith.constant 5.000000e-01 : f32
    %83 = vector.broadcast %cst_40 : f32 to vector<2x16xf32>
    %84 = arith.subf %77, %83 : vector<2x16xf32>
    %85 = arith.select %79, %82, %84 : vector<2x16xi1>, vector<2x16xf32>
    %86 = arith.addf %75, %85 : vector<2x16xf32>
    %87 = vector.shape_cast %86 : vector<2x16xf32> to vector<1x2x16xf32>
    %cst_41 = arith.constant dense<0.000000e+00> : vector<1xf32>
    %88 = vector.multi_reduction <add>, %87, %cst_41 [1, 2] : vector<1x2x16xf32> to vector<1xf32>
    %89 = vector.shape_cast %88 : vector<1xf32> to vector<1x1x1xf32>
    %90 = vector.extract %89[0, 0, 0] : f32 from vector<1x1x1xf32>
    %cst_42 = arith.constant 3.125000e-02 : f32
    %91 = arith.mulf %90, %cst_42 : f32
    %92 = vector.shape_cast %34 : vector<2x16xf32> to vector<2x16x1xf32>
    %93 = vector.broadcast %39 : vector<2x1x16xf32> to vector<2x16x16xf32>
    %94 = vector.broadcast %92 : vector<2x16x1xf32> to vector<2x16x16xf32>
    %95 = arith.subf %93, %94 : vector<2x16x16xf32>
    %96 = math.absf %95 : vector<2x16x16xf32>
    %cst_43 = arith.constant 3.000000e+00 : f32
    %97 = vector.broadcast %cst_43 : f32 to vector<2x16x16xf32>
    %98 = arith.cmpf ole, %96, %97 : vector<2x16x16xf32>
    %cst_44 = arith.constant 0.166666672 : f32
    %99 = vector.broadcast %cst_44 : f32 to vector<2x16x16xf32>
    %100 = arith.mulf %99, %96 : vector<2x16x16xf32>
    %101 = arith.mulf %100, %96 : vector<2x16x16xf32>
    %cst_45 = arith.constant 1.500000e+00 : f32
    %102 = vector.broadcast %cst_45 : f32 to vector<2x16x16xf32>
    %103 = arith.subf %96, %102 : vector<2x16x16xf32>
    %104 = arith.select %98, %101, %103 : vector<2x16x16xi1>, vector<2x16x16xf32>
    %105 = vector.shape_cast %104 : vector<2x16x16xf32> to vector<1x2x16x16xf32>
    %cst_46 = arith.constant dense<0.000000e+00> : vector<1xf32>
    %106 = vector.multi_reduction <add>, %105, %cst_46 [1, 2, 3] : vector<1x2x16x16xf32> to vector<1xf32>
    %107 = vector.shape_cast %106 : vector<1xf32> to vector<1x1x1x1xf32>
    %108 = vector.extract %107[0, 0, 0, 0] : f32 from vector<1x1x1x1xf32>
    %cst_47 = arith.constant 3.906250e-03 : f32
    %109 = arith.mulf %108, %cst_47 : f32
    %cst_48 = arith.constant 1.000000e-01 : f32
    %110 = arith.mulf %91, %cst_48 : f32
    %111 = arith.addf %110, %109 : f32
    %112 = tpu.iota {dimensions = array<i32: 1>} : vector<8x128xi32>
    %c0_i32 = arith.constant 0 : i32
    %113 = vector.broadcast %c0_i32 : i32 to vector<8x128xi32>
    %114 = arith.cmpi eq, %112, %113 : vector<8x128xi32>
    %c1_i32 = arith.constant 1 : i32
    %115 = vector.broadcast %c1_i32 : i32 to vector<8x128xi32>
    %116 = arith.cmpi eq, %112, %115 : vector<8x128xi32>
    %cst_49 = arith.constant 0.000000e+00 : f32
    %117 = vector.broadcast %111 : f32 to vector<8x128xf32>
    %118 = vector.broadcast %cst_49 : f32 to vector<8x128xf32>
    %119 = arith.select %116, %117, %118 : vector<8x128xi1>, vector<8x128xf32>
    %120 = vector.broadcast %65 : f32 to vector<8x128xf32>
    %121 = arith.select %114, %120, %119 : vector<8x128xi1>, vector<8x128xf32>
    %122 = vector.shape_cast %121 : vector<8x128xf32> to vector<1x8x128xf32>
    %c0_50 = arith.constant 0 : index
    %c0_51 = arith.constant 0 : index
    %c0_52 = arith.constant 0 : index
    %123 = vector.load %arg7[%c0_50, %c0_51, %c0_52] : memref<1x8x128xf32, #tpu.memory_space<vmem>>, vector<1x8x128xf32>
    tpu.vector_store %arg7[%c0_50, %c0_51, %c0_52], %122 {strides = array<i32>} : memref<1x8x128xf32, #tpu.memory_space<vmem>>, vector<1x8x128xf32>,
    return
  }
  func.func @transform_0(%arg0: i32) -> (i32, i32, i32) {
    %c0_i32 = arith.constant 0 : i32
    %c0_i32_0 = arith.constant 0 : i32
    %c0_i32_1 = arith.constant 0 : i32
    return %arg0, %c0_i32, %c0_i32_0 : i32, i32, i32
  }
  func.func @transform_1(%arg0: i32) -> (i32, i32, i32, i32) {
    %c0_i32 = arith.constant 0 : i32
    %c0_i32_0 = arith.constant 0 : i32
    %c0_i32_1 = arith.constant 0 : i32
    %c0_i32_2 = arith.constant 0 : i32
    return %c0_i32, %arg0, %c0_i32_0, %c0_i32_1 : i32, i32, i32, i32
  }
  func.func @transform_2(%arg0: i32) -> (i32, i32, i32) {
    %c0_i32 = arith.constant 0 : i32
    %c0_i32_0 = arith.constant 0 : i32
    %c0_i32_1 = arith.constant 0 : i32
    return %arg0, %c0_i32, %c0_i32_0 : i32, i32, i32
  }
  func.func @transform_3(%arg0: i32) -> (i32, i32, i32) {
    %c0_i32 = arith.constant 0 : i32
    %c0_i32_0 = arith.constant 0 : i32
    %c0_i32_1 = arith.constant 0 : i32
    return %c0_i32, %arg0, %c0_i32_0 : i32, i32, i32
  }
  func.func @transform_4(%arg0: i32) -> (i32, i32, i32) {
    %c0_i32 = arith.constant 0 : i32
    %c0_i32_0 = arith.constant 0 : i32
    %c0_i32_1 = arith.constant 0 : i32
    return %arg0, %c0_i32, %c0_i32_0 : i32, i32, i32
  }
  func.func @transform_5(%arg0: i32) -> (i32, i32) {
    %c0_i32 = arith.constant 0 : i32
    %c0_i32_0 = arith.constant 0 : i32
    %c0_i32_1 = arith.constant 0 : i32
    return %c0_i32, %c0_i32_0 : i32, i32
  }
  func.func @transform_6(%arg0: i32) -> (i32, i32, i32) {
    %c0_i32 = arith.constant 0 : i32
    %c0_i32_0 = arith.constant 0 : i32
    %c0_i32_1 = arith.constant 0 : i32
    return %arg0, %c0_i32, %c0_i32_0 : i32, i32, i32
  }
}

</mosaic_0001>

<llo_original>
// kernel: a2j_loss_pallas.1
$region0: #{a2j_loss_pallas.1}
  #allocation0 [shape = 'u32[]', space=smem, size = 0x4, offset = 0x4, fixed_abs, tag = 'smem constant byte address 0x4 - core index']
  #allocation1 [shape = 'u32[72,128]{1,0:T(1,128)}', space=vmem, size = 0x9000, scoped, tag = 'internal scratch']
  %s0 = inlined_call_operand.vmem [shape: f32[2,16,128], index: 0, kind: input, shape index: {}]
  %s1 = inlined_call_operand.vmem [shape: f32[2,2,16,128], index: 1, kind: input, shape index: {}]
  %s2 = inlined_call_operand.vmem [shape: f32[2,16,128], index: 2, kind: input, shape index: {}]
  %s3 = inlined_call_operand.vmem [shape: f32[2,2,16], index: 3, kind: input, shape index: {}]
  %s4 = inlined_call_operand.vmem [shape: f32[2,1,16], index: 4, kind: input, shape index: {}]
  %s5 = inlined_call_operand.vmem [shape: f32[128,8], index: 5, kind: input, shape index: {}]
  %s6 = inlined_call_operand.vmem [shape: f32[1,8,128], index: 6, kind: output, shape index: {}]
  %s7 = sld [smem:[#allocation0]]
  $region34: #{a2j_loss_pallas.1} parent=0
    _
  %s9 = ssub.s32 1, %s7
  %s10 = scalar_select 0, %s9, %s7
  // Predicated region
  $region2: #{a2j_loss_pallas.1} parent=0 // pred_check
    _
  $region3: #{a2j_loss_pallas.1} parent=0 // pred_check_branch
    %12 = sbr.rel (0) target = $region5
  $region4: #{a2j_loss_pallas.1} parent=0 // pred_region
    _
  $region5: #{a2j_loss_pallas.1} parent=0 // pred_fallthru
    _
  // Predicated region
  $region6: #{a2j_loss_pallas.1} parent=0 // pred_check
    _
  $region7: #{a2j_loss_pallas.1} parent=0 // pred_check_branch
    %14 = sbr.rel (0) target = $region9
  $region8: #{a2j_loss_pallas.1} parent=0 // pred_region
    _
  $region9: #{a2j_loss_pallas.1} parent=0 // pred_fallthru
    _
  // Predicated region
  $region10: #{a2j_loss_pallas.1} parent=0 // pred_check
    _
  $region11: #{a2j_loss_pallas.1} parent=0 // pred_check_branch
    %16 = sbr.rel (0) target = $region13
  $region12: #{a2j_loss_pallas.1} parent=0 // pred_region
    _
  $region13: #{a2j_loss_pallas.1} parent=0 // pred_fallthru
    _
  // Predicated region
  $region14: #{a2j_loss_pallas.1} parent=0 // pred_check
    _
  $region15: #{a2j_loss_pallas.1} parent=0 // pred_check_branch
    %18 = sbr.rel (0) target = $region17
  $region16: #{a2j_loss_pallas.1} parent=0 // pred_region
    _
  $region17: #{a2j_loss_pallas.1} parent=0 // pred_fallthru
    _
  // Predicated region
  $region18: #{a2j_loss_pallas.1} parent=0 // pred_check
    _
  $region19: #{a2j_loss_pallas.1} parent=0 // pred_check_branch
    %20 = sbr.rel (0) target = $region21
  $region20: #{a2j_loss_pallas.1} parent=0 // pred_region
    _
  $region21: #{a2j_loss_pallas.1} parent=0 // pred_fallthru
    _
  // Predicated region
  $region22: #{a2j_loss_pallas.1} parent=0 // pred_check
    _
  $region23: #{a2j_loss_pallas.1} parent=0 // pred_check_branch
    %22 = sbr.rel (0) target = $region25
  $region24: #{a2j_loss_pallas.1} parent=0 // pred_region
    _
  $region25: #{a2j_loss_pallas.1} parent=0 // pred_fallthru
    _
  %v23 = vld [vmem:[%s0] sm:$0xff]
  %v24 = vld [vmem:[%s0 + $0x8] sm:$0xff]
  %v25 = vld [vmem:[%s0 + $0x10] sm:$0xff]
  %v26 = vld [vmem:[%s0 + $0x18] sm:$0xff]
  %v27 = vld [vmem:[%s1] sm:$0xff]
  %v28 = vld [vmem:[%s1 + $0x8] sm:$0xff]
  %v29 = vld [vmem:[%s1 + $0x10] sm:$0xff]
  %v30 = vld [vmem:[%s1 + $0x18] sm:$0xff]
  %s31 = scalar_lea.vmem %s1, 32
  %v32 = vld [vmem:[%s31] sm:$0xff]
  %v33 = vld [vmem:[%s31 + $0x8] sm:$0xff]
  %v34 = vld [vmem:[%s31 + $0x10] sm:$0xff]
  %v35 = vld [vmem:[%s31 + $0x18] sm:$0xff]
  %v36 = vld [vmem:[%s2] sm:$0xff]
  %v37 = vld [vmem:[%s2 + $0x8] sm:$0xff]
  %v38 = vld [vmem:[%s2 + $0x10] sm:$0xff]
  %v39 = vld [vmem:[%s2 + $0x18] sm:$0xff]
  %40 = vmax.xlane.f32.xlu0 %v23
  %v41 = vpop.xlane.xlu0 %40
  %42 = vmax.xlane.f32.xlu0 %v24
  %v43 = vpop.xlane.xlu0 %42
  %44 = vmax.xlane.f32.xlu0 %v25
  %v45 = vpop.xlane.xlu0 %44
  %46 = vmax.xlane.f32.xlu0 %v26
  %v47 = vpop.xlane.xlu0 %46
  %v48 = vsub.f32 %v23, %v41
  %v49 = vsub.f32 %v24, %v43
  %v50 = vsub.f32 %v25, %v45
  %v51 = vsub.f32 %v26, %v47
  %v52 = vmul.f32 %v48, 1.442695
  %v53 = vpow.pop %v52
  %v54 = vmul.f32 %v49, 1.442695
  %v55 = vpow.pop %v54
  %v56 = vmul.f32 %v50, 1.442695
  %v57 = vpow.pop %v56
  %v58 = vmul.f32 %v51, 1.442695
  %v59 = vpow.pop %v58
  %v60 = vld [vmem:[%s5] sm:$0xff]
  %v61 = vld [vmem:[%s5 + $0x8] sm:$0xff]
  %v62 = vld [vmem:[%s5 + $0x10] sm:$0xff]
  %v63 = vld [vmem:[%s5 + $0x18] sm:$0xff]
  %v64 = vld [vmem:[%s5 + $0x20] sm:$0xff]
  %v65 = vld [vmem:[%s5 + $0x28] sm:$0xff]
  %v66 = vld [vmem:[%s5 + $0x30] sm:$0xff]
  %v67 = vld [vmem:[%s5 + $0x38] sm:$0xff]
  %v68 = vld [vmem:[%s5 + $0x40] sm:$0xff]
  %v69 = vld [vmem:[%s5 + $0x48] sm:$0xff]
  %v70 = vld [vmem:[%s5 + $0x50] sm:$0xff]
  %v71 = vld [vmem:[%s5 + $0x58] sm:$0xff]
  %v72 = vld [vmem:[%s5 + $0x60] sm:$0xff]
  %v73 = vld [vmem:[%s5 + $0x68] sm:$0xff]
  %v74 = vld [vmem:[%s5 + $0x70] sm:$0xff]
  %v75 = vld [vmem:[%s5 + $0x78] sm:$0xff]
  %76 = vmatpush.msra.mxu0 %v75
  %77 = vmatpush.msra.mxu0 %v74
  %78 = vmatpush.msra.mxu0 %v73
  %79 = vmatpush.msra.mxu0 %v72
  %80 = vmatpush.msra.mxu0 %v71
  %81 = vmatpush.msra.mxu0 %v70
  %82 = vmatpush.msra.mxu0 %v69
  %83 = vmatpush.msra.mxu0 %v68
  %84 = vmatpush.msra.mxu0 %v67
  %85 = vmatpush.msra.mxu0 %v66
  %86 = vmatpush.msra.mxu0 %v65
  %87 = vmatpush.msra.mxu0 %v64
  %88 = vmatpush.msra.mxu0 %v63
  %89 = vmatpush.msra.mxu0 %v62
  %90 = vmatpush.msra.mxu0 %v61
  %91 = vmatpush.msra.mxu0 %v60
  %92 = vmatmul.f32.gmra.mxu0 %v53
  %v93 = vpop.f32.mrf.mxu0
  %v94 = vadd.f32 0.0, %v93
  %95 = vmatmul.f32.gmra.mxu0 %v55
  %v96 = vpop.f32.mrf.mxu0
  %v97 = vadd.f32 0.0, %v96
  %98 = vmatmul.f32.gmra.mxu0 %v57
  %v99 = vpop.f32.mrf.mxu0
  %v100 = vadd.f32 0.0, %v99
  %101 = vmatmul.f32.gmra.mxu0 %v59
  %v102 = vpop.f32.mrf.mxu0
  %v103 = vadd.f32 0.0, %v102
  %104 = vdwg.mxu0
  %v105 = vmul.f32 %v53, %v27
  %v106 = vmul.f32 %v55, %v28
  %v107 = vmul.f32 %v57, %v29
  %v108 = vmul.f32 %v59, %v30
  %109 = vadd.xlane.f32.xlu0 %v105
  %v110 = vpop.xlane.xlu0 %109
  %111 = vadd.xlane.f32.xlu0 %v106
  %v112 = vpop.xlane.xlu0 %111
  %113 = vadd.xlane.f32.xlu0 %v107
  %v114 = vpop.xlane.xlu0 %113
  %115 = vadd.xlane.f32.xlu0 %v108
  %v116 = vpop.xlane.xlu0 %115
  %v117 = vmul.f32 %v53, %v32
  %v118 = vmul.f32 %v55, %v33
  %v119 = vmul.f32 %v57, %v34
  %v120 = vmul.f32 %v59, %v35
  %121 = vadd.xlane.f32.xlu0 %v117
  %v122 = vpop.xlane.xlu0 %121
  %123 = vadd.xlane.f32.xlu0 %v118
  %v124 = vpop.xlane.xlu0 %123
  %125 = vadd.xlane.f32.xlu0 %v119
  %v126 = vpop.xlane.xlu0 %125
  %127 = vadd.xlane.f32.xlu0 %v120
  %v128 = vpop.xlane.xlu0 %127
  %v129 = vmul.f32 %v53, %v36
  %v130 = vmul.f32 %v55, %v37
  %v131 = vmul.f32 %v57, %v38
  %v132 = vmul.f32 %v59, %v39
  %133 = vadd.xlane.f32.xlu0 %v129
  %v134 = vpop.xlane.xlu0 %133
  %135 = vadd.xlane.f32.xlu0 %v130
  %v136 = vpop.xlane.xlu0 %135
  %137 = vadd.xlane.f32.xlu0 %v131
  %v138 = vpop.xlane.xlu0 %137
  %139 = vadd.xlane.f32.xlu0 %v132
  %v140 = vpop.xlane.xlu0 %139
  %v141 = vrcp.pop %v94
  %v142 = vmul.f32 %v94, %v141
  %v143 = vsub.f32 1.0, %v142
  %v144 = vmul.f32 %v141, %v143
  %v145 = vadd.f32 %v141, %v144
  %vm146 = vweird.f32 %v94
  %vm147 = vweird.f32 %v141
  %vm148 = vmor %vm146, %vm147
  %v149 = vsel %vm148, %v141, %v145
  %v150 = vand.u32 2147483647, %v94
  %vm151 = vcmp.eq.f32.partialorder %v150, 8.507059e+37
  %v152 = vand.u32 %v94, 2147483648
  %v153 = vor.u32 1.1754944e-38, %v152
  %v154 = vsel %vm151, %v153, %v149
  %v155 = vrcp.pop %v97
  %v156 = vmul.f32 %v97, %v155
  %v157 = vsub.f32 1.0, %v156
  %v158 = vmul.f32 %v155, %v157
  %v159 = vadd.f32 %v155, %v158
  %vm160 = vweird.f32 %v97
  %vm161 = vweird.f32 %v155
  %vm162 = vmor %vm160, %vm161
  %v163 = vsel %vm162, %v155, %v159
  %v164 = vand.u32 2147483647, %v97
  %vm165 = vcmp.eq.f32.partialorder %v164, 8.507059e+37
  %v166 = vand.u32 %v97, 2147483648
  %v167 = vor.u32 1.1754944e-38, %v166
  %v168 = vsel %vm165, %v167, %v163
  %v169 = vrcp.pop %v100
  %v170 = vmul.f32 %v100, %v169
  %v171 = vsub.f32 1.0, %v170
  %v172 = vmul.f32 %v169, %v171
  %v173 = vadd.f32 %v169, %v172
  %vm174 = vweird.f32 %v100
  %vm175 = vweird.f32 %v169
  %vm176 = vmor %vm174, %vm175
  %v177 = vsel %vm176, %v169, %v173
  %v178 = vand.u32 2147483647, %v100
  %vm179 = vcmp.eq.f32.partialorder %v178, 8.507059e+37
  %v180 = vand.u32 %v100, 2147483648
  %v181 = vor.u32 1.1754944e-38, %v180
  %v182 = vsel %vm179, %v181, %v177
  %v183 = vrcp.pop %v103
  %v184 = vmul.f32 %v103, %v183
  %v185 = vsub.f32 1.0, %v184
  %v186 = vmul.f32 %v183, %v185
  %v187 = vadd.f32 %v183, %v186
  %vm188 = vweird.f32 %v103
  %vm189 = vweird.f32 %v183
  %vm190 = vmor %vm188, %vm189
  %v191 = vsel %vm190, %v183, %v187
  %v192 = vand.u32 2147483647, %v103
  %vm193 = vcmp.eq.f32.partialorder %v192, 8.507059e+37
  %v194 = vand.u32 %v103, 2147483648
  %v195 = vor.u32 1.1754944e-38, %v194
  %v196 = vsel %vm193, %v195, %v191
  %201 = vrot.lane.b32.xlu0 %v154, 1
  %v202 = vpop.permute.xlu0 %201
  %203 = vrot.lane.b32.xlu0 %v168, 1
  %v204 = vpop.permute.xlu0 %203
  %205 = vrot.lane.b32.xlu0 %v182, 1
  %v206 = vpop.permute.xlu0 %205
  %207 = vrot.lane.b32.xlu0 %v196, 1
  %v208 = vpop.permute.xlu0 %207
  %v213 = vmul.f32 %v94, %v202
  %v214 = vmul.f32 %v97, %v204
  %v215 = vmul.f32 %v100, %v206
  %v216 = vmul.f32 %v103, %v208
  %217 = vrot.lane.b32.xlu0 %v154, 2
  %v218 = vpop.permute.xlu0 %217
  %219 = vrot.lane.b32.xlu0 %v168, 2
  %v220 = vpop.permute.xlu0 %219
  %221 = vrot.lane.b32.xlu0 %v182, 2
  %v222 = vpop.permute.xlu0 %221
  %223 = vrot.lane.b32.xlu0 %v196, 2
  %v224 = vpop.permute.xlu0 %223
  %v229 = vmul.f32 %v94, %v218
  %v230 = vmul.f32 %v97, %v220
  %v231 = vmul.f32 %v100, %v222
  %v232 = vmul.f32 %v103, %v224
  %v233 = vmul.f32 %v110, %v154
  %v234 = vmul.f32 %v112, %v168
  %v235 = vmul.f32 %v114, %v182
  %v236 = vmul.f32 %v116, %v196
  %241 = vrot.lane.b32.xlu0 %v233, 1
  %v242 = vpop.permute.xlu0 %241
  %243 = vrot.lane.b32.xlu0 %v234, 1
  %v244 = vpop.permute.xlu0 %243
  %245 = vrot.lane.b32.xlu0 %v235, 1
  %v246 = vpop.permute.xlu0 %245
  %247 = vrot.lane.b32.xlu0 %v236, 1
  %v248 = vpop.permute.xlu0 %247
  %v253 = vadd.f32 %v213, %v242
  %v254 = vadd.f32 %v214, %v244
  %v255 = vadd.f32 %v215, %v246
  %v256 = vadd.f32 %v216, %v248
  %v257 = vmul.f32 %v122, %v154
  %v258 = vmul.f32 %v124, %v168
  %v259 = vmul.f32 %v126, %v182
  %v260 = vmul.f32 %v128, %v196
  %265 = vrot.lane.b32.xlu0 %v257, 2
  %v266 = vpop.permute.xlu0 %265
  %267 = vrot.lane.b32.xlu0 %v258, 2
  %v268 = vpop.permute.xlu0 %267
  %269 = vrot.lane.b32.xlu0 %v259, 2
  %v270 = vpop.permute.xlu0 %269
  %271 = vrot.lane.b32.xlu0 %v260, 2
  %v272 = vpop.permute.xlu0 %271
  %v277 = vadd.f32 %v229, %v266
  %v278 = vadd.f32 %v230, %v268
  %v279 = vadd.f32 %v231, %v270
  %v280 = vadd.f32 %v232, %v272
  %v281 = vmul.f32 %v134, %v154
  %v282 = vmul.f32 %v136, %v168
  %v283 = vmul.f32 %v138, %v182
  %v284 = vmul.f32 %v140, %v196
  %v285 = vld [vmem:[%s3] sm:$0x3]
  %s286 = scalar_lea.vmem %s3, 2
  %v287 = vld [vmem:[%s286] sm:$0x3]
  %v288 = vld [vmem:[%s4] sm:$0x1]
  %v289 = vld [vmem:[%s4 + $0x1] sm:$0x1]
  %294 = vset.pattern.permute.xlu0 1
  %295 = vperm.xlu0 %294, %v213
  %v296 = vpop.permute.xlu0 %295
  %297 = vset.pattern.permute.xlu0 1
  %298 = vperm.xlu0 %297, %v214
  %v299 = vpop.permute.xlu0 %298
  %300 = vset.pattern.permute.xlu0 1
  %301 = vperm.xlu0 %300, %v215
  %v302 = vpop.permute.xlu0 %301
  %303 = vset.pattern.permute.xlu0 1
  %304 = vperm.xlu0 %303, %v216
  %v305 = vpop.permute.xlu0 %304
  %v306 = vlaneseq
  %v307 = vand.u32 %v306, 127
  %v308 = vperm.slane %v296, %v307
  %v309 = vadd.s32 %v307, 4294967288
  %v310 = vperm.slane %v299, %v309
  %vm311 = vcmask 130112
  %v312 = vsel %vm311, %v310, %v308
  %v313 = vperm.slane %v302, %v307
  %v314 = vperm.slane %v305, %v309
  %v315 = vsel %vm311, %v314, %v313
  %vm316 = vcmask 1041409
  %v317 = vsel %vm316, %v315, %v312
  %v319 = vsub.f32 %v285, %v317
  %v320 = vand.u32 2147483647, %v319
  %vm321 = vcmp.le.f32.partialorder %v320, 1.0
  %v322 = vmul.f32 %v320, 0.5
  %v323 = vmul.f32 %v322, %v320
  %v324 = vsub.f32 %v320, 0.5
  %v325 = vsel %vm321, %v323, %v324
  %330 = vset.pattern.permute.xlu0 2
  %331 = vperm.xlu0 %330, %v229
  %v332 = vpop.permute.xlu0 %331
  %333 = vset.pattern.permute.xlu0 2
  %334 = vperm.xlu0 %333, %v230
  %v335 = vpop.permute.xlu0 %334
  %336 = vset.pattern.permute.xlu0 2
  %337 = vperm.xlu0 %336, %v231
  %v338 = vpop.permute.xlu0 %337
  %339 = vset.pattern.permute.xlu0 2
  %340 = vperm.xlu0 %339, %v232
  %v341 = vpop.permute.xlu0 %340
  %v342 = vperm.slane %v332, %v307
  %v343 = vperm.slane %v335, %v309
  %v344 = vsel %vm311, %v343, %v342
  %v345 = vperm.slane %v338, %v307
  %v346 = vperm.slane %v341, %v309
  %v347 = vsel %vm311, %v346, %v345
  %v348 = vsel %vm316, %v347, %v344
  %v350 = vsub.f32 %v287, %v348
  %v351 = vand.u32 2147483647, %v350
  %vm352 = vcmp.le.f32.partialorder %v351, 1.0
  %v353 = vmul.f32 %v351, 0.5
  %v354 = vmul.f32 %v353, %v351
  %v355 = vsub.f32 %v351, 0.5
  %v356 = vsel %vm352, %v354, %v355
  %v357 = vadd.f32 %v325, %v356
  %vm358 = vcmask 123904
  %v359 = vsel %vm358, %v357, 0.0
  %360 = vadd.xlane.f32.xlu0 %v359
  %v361 = vpop.xlane.xlu0 %360
  %v362 = vrot.slane %v361, 4
  %v363 = vadd.f32 %v361, %v362
  %v364 = vrot.slane %v363, 2
  %v365 = vadd.f32 %v363, %v364
  %v366 = vrot.slane %v365, 1
  %v367 = vadd.f32 %v365, %v366
  %s368 = vtos %v367
  %s369 = smul.f32 %s368, 0.03125
  %374 = vset.pattern.permute.xlu0 1
  %375 = vperm.xlu0 %374, %v253
  %v376 = vpop.permute.xlu0 %375
  %377 = vset.pattern.permute.xlu0 1
  %378 = vperm.xlu0 %377, %v254
  %v379 = vpop.permute.xlu0 %378
  %380 = vset.pattern.permute.xlu0 1
  %381 = vperm.xlu0 %380, %v255
  %v382 = vpop.permute.xlu0 %381
  %383 = vset.pattern.permute.xlu0 1
  %384 = vperm.xlu0 %383, %v256
  %v385 = vpop.permute.xlu0 %384
  %v386 = vperm.slane %v376, %v307
  %v387 = vperm.slane %v379, %v309
  %v388 = vsel %vm311, %v387, %v386
  %v389 = vperm.slane %v382, %v307
  %v390 = vperm.slane %v385, %v309
  %v391 = vsel %vm311, %v390, %v389
  %v392 = vsel %vm316, %v391, %v388
  %v394 = vsub.f32 %v285, %v392
  %v395 = vand.u32 2147483647, %v394
  %vm396 = vcmp.le.f32.partialorder %v395, 1.0
  %v397 = vmul.f32 %v395, 0.5
  %v398 = vmul.f32 %v397, %v395
  %v399 = vsub.f32 %v395, 0.5
  %v400 = vsel %vm396, %v398, %v399
  %405 = vset.pattern.permute.xlu0 2
  %406 = vperm.xlu0 %405, %v277
  %v407 = vpop.permute.xlu0 %406
  %408 = vset.pattern.permute.xlu0 2
  %409 = vperm.xlu0 %408, %v278
  %v410 = vpop.permute.xlu0 %409
  %411 = vset.pattern.permute.xlu0 2
  %412 = vperm.xlu0 %411, %v279
  %v413 = vpop.permute.xlu0 %412
  %414 = vset.pattern.permute.xlu0 2
  %415 = vperm.xlu0 %414, %v280
  %v416 = vpop.permute.xlu0 %415
  %v417 = vperm.slane %v407, %v307
  %v418 = vperm.slane %v410, %v309
  %v419 = vsel %vm311, %v418, %v417
  %v420 = vperm.slane %v413, %v307
  %v421 = vperm.slane %v416, %v309
  %v422 = vsel %vm311, %v421, %v420
  %v423 = vsel %vm316, %v422, %v419
  %v425 = vsub.f32 %v287, %v423
  %v426 = vand.u32 2147483647, %v425
  %vm427 = vcmp.le.f32.partialorder %v426, 1.0
  %v428 = vmul.f32 %v426, 0.5
  %v429 = vmul.f32 %v428, %v426
  %v430 = vsub.f32 %v426, 0.5
  %v431 = vsel %vm427, %v429, %v430
  %v432 = vadd.f32 %v400, %v431
  %v433 = vsel %vm358, %v432, 0.0
  %434 = vadd.xlane.f32.xlu0 %v433
  %v435 = vpop.xlane.xlu0 %434
  %v436 = vrot.slane %v435, 4
  %v437 = vadd.f32 %v435, %v436
  %v438 = vrot.slane %v437, 2
  %v439 = vadd.f32 %v437, %v438
  %v440 = vrot.slane %v439, 1
  %v441 = vadd.f32 %v439, %v440
  %s442 = vtos %v441
  %s443 = smul.f32 %s442, 0.03125
  %v446 = vperm.slane %v288, 0
  %v447 = vperm.slane %v289, 0
  %451 = vset.pattern.permute.xlu0 0
  %452 = vperm.xlu0 %451, %v281
  %v453 = vpop.permute.xlu0 %452
  %456 = vset.pattern.permute.xlu0 0
  %457 = vperm.xlu0 %456, %v282
  %v458 = vpop.permute.xlu0 %457
  %461 = vset.pattern.permute.xlu0 0
  %462 = vperm.xlu0 %461, %v283
  %v463 = vpop.permute.xlu0 %462
  %466 = vset.pattern.permute.xlu0 0
  %467 = vperm.xlu0 %466, %v284
  %v468 = vpop.permute.xlu0 %467
  %v470 = vsub.f32 %v446, %v453
  %v471 = vsub.f32 %v446, %v458
  %v472 = vsub.f32 %v447, %v463
  %v473 = vsub.f32 %v447, %v468
  %v474 = vand.u32 2147483647, %v470
  %v475 = vand.u32 2147483647, %v471
  %v476 = vand.u32 2147483647, %v472
  %v477 = vand.u32 2147483647, %v473
  %vm478 = vcmp.le.f32.partialorder %v474, 3.0
  %vm479 = vcmp.le.f32.partialorder %v475, 3.0
  %vm480 = vcmp.le.f32.partialorder %v476, 3.0
  %vm481 = vcmp.le.f32.partialorder %v477, 3.0
  %v482 = vmul.f32 %v474, 0.16666667
  %v483 = vmul.f32 %v475, 0.16666667
  %v484 = vmul.f32 %v476, 0.16666667
  %v485 = vmul.f32 %v477, 0.16666667
  %v486 = vmul.f32 %v482, %v474
  %v487 = vmul.f32 %v483, %v475
  %v488 = vmul.f32 %v484, %v476
  %v489 = vmul.f32 %v485, %v477
  %v490 = vsub.f32 %v474, 1.5
  %v491 = vsub.f32 %v475, 1.5
  %v492 = vsub.f32 %v476, 1.5
  %v493 = vsub.f32 %v477, 1.5
  %v494 = vsel %vm478, %v486, %v490
  %v495 = vsel %vm479, %v487, %v491
  %v496 = vsel %vm480, %v488, %v492
  %v497 = vsel %vm481, %v489, %v493
  %vm498 = vcmask 130048
  %v499 = vsel %vm498, %v494, 0.0
  %v500 = vsel %vm498, %v495, 0.0
  %v501 = vadd.f32 %v499, %v500
  %v502 = vsel %vm498, %v496, 0.0
  %v503 = vadd.f32 %v501, %v502
  %v504 = vsel %vm498, %v497, 0.0
  %v505 = vadd.f32 %v503, %v504
  %506 = vadd.xlane.f32.xlu0 %v505
  %v507 = vpop.xlane.xlu0 %506
  %v508 = vrot.slane %v507, 4
  %v509 = vadd.f32 %v507, %v508
  %v510 = vrot.slane %v509, 2
  %v511 = vadd.f32 %v509, %v510
  %v512 = vrot.slane %v511, 1
  %v513 = vadd.f32 %v511, %v512
  %s514 = vtos %v513
  %s515 = smul.f32 %s514, 0.00390625
  %s516 = smul.f32 %s443, 0.1
  %s517 = sadd.f32 %s516, %s515
  %vm518 = vcmp.eq.s32.totalorder %v307, 0
  %vm519 = vcmp.eq.s32.totalorder %v307, 1
  %v520 = vstv %s517
  %v521 = vsel %vm519, %v520, 0.0
  %v522 = vstv %s369
  %v523 = vsel %vm518, %v522, %v521
  %524 = vst [vmem:[%s6] sm:$0xff] %v523
  // Predicated region
  $region26: #{a2j_loss_pallas.1} parent=0 // pred_check
    _
  $region27: #{a2j_loss_pallas.1} parent=0 // pred_check_branch
    %526 = sbr.rel (0) target = $region29
  $region28: #{a2j_loss_pallas.1} parent=0 // pred_region
    _
  $region29: #{a2j_loss_pallas.1} parent=0 // pred_fallthru
    _
  // Predicated region
  $region30: #{a2j_loss_pallas.1} parent=0 // pred_check
    _
  $region31: #{a2j_loss_pallas.1} parent=0 // pred_check_branch
    %528 = sbr.rel (0) target = $region33
  $region32: #{a2j_loss_pallas.1} parent=0 // pred_region
    _
  $region33: #{a2j_loss_pallas.1} parent=0 // pred_fallthru
    _

</llo_original>
